<compile_context>
chip_gen: v7x
topology: tpu7x:2x2x1
jax: 0.10.0
libtpu: 0.0.40
codegen_flags: <defaults>
</compile_context>

<pallas_src>
import jax
import jax.numpy as jnp
from jax.experimental import pallas as pl
from jax.experimental.pallas import tpu as pltpu

_LANES = 128
_ACC_ROWS = 512                 # fixed accumulator: 512 x 128 f32 = 256 KiB
_SMALL_ROWS = 1024              # <= 0.5 MiB per f32 input -> single-block path
_VMEM_LIMIT = 32 * 1024 * 1024  # fits v5e/v6e (128 MiB phys) and v7x (64 MiB/TC)


def _cdiv(a, b):
    return -(-a // b)


def _round_up(a, b):
    return _cdiv(a, b) * b


def _single_block_kernel(x_ref, y_ref, out_ref):
    d = x_ref[...].astype(jnp.float32) - y_ref[...].astype(jnp.float32)
    out_ref[0, 0] = jnp.sum(d * d)


def _make_tiled_kernel(valid_rows: int, tile_rows: int):
    """Streaming squared-diff sum: per-step VPU accumulate into a fixed-size
    VMEM tile; one cross-lane reduce + SMEM scalar write per core at the end."""

    def kernel(x_ref, y_ref, out_ref, acc_ref):
        i = pl.program_id(1)

        @pl.when(i == 0)
        def _init():
            acc_ref[...] = jnp.zeros_like(acc_ref)

        d = x_ref[...].astype(jnp.float32) - y_ref[...].astype(jnp.float32)

        # Global (unclamped) tile id; the input index_map clamps the DMA, the
        # predicate below keeps the math consistent with the unclamped id.
        gt = pl.program_id(0) * pl.num_programs(1) + i
        is_full = (gt + 1) * tile_rows <= valid_rows

        @pl.when(is_full)
        def _full():
            dd = d * d
            acc_ref[...] += dd.reshape(-1, _ACC_ROWS, _LANES).sum(axis=0)

        @pl.when(jnp.logical_not(is_full))
        def _partial():
            # Partial / duplicated last tile: zero out-of-range rows BEFORE
            # squaring so garbage (even NaN/Inf) cannot leak into the sum.
            row0 = gt * tile_rows
            rid = row0 + jax.lax.broadcasted_iota(
                jnp.int32, (tile_rows, _LANES), 0)
            dm = jnp.where(rid < valid_rows, d, jnp.float32(0.0))
            acc_ref[...] += (dm * dm).reshape(-1, _ACC_ROWS, _LANES).sum(axis=0)

        @pl.when(i == pl.num_programs(1) - 1)
        def _finalize():
            out_ref[0, 0] = jnp.sum(acc_ref[...])

    return kernel


def _choose_tiling(rows: int, tile_rows: int):
    """Pick (tile_rows_eff, total_tiles, ncores). Tile rows are multiples of
    _ACC_ROWS; small odd tile counts are rebalanced to an even count so both
    cores get real work (no duplicated-tile DMA on 1-TC chips)."""
    tr = min(tile_rows, _round_up(_cdiv(rows, 2), _ACC_ROWS))
    total = _cdiv(rows, tr)
    if total % 2 == 1 and total < 8:
        tr2 = min(tile_rows, _round_up(_cdiv(rows, total + 1), _ACC_ROWS))
        total2 = _cdiv(rows, tr2)
        if total2 % 2 == 0:
            tr, total = tr2, total2
    ncores = 2 if (total % 2 == 0 or total >= 8) else 1
    return tr, total, ncores


def mse_loss_pallas(x, y, *, tile_rows: int = 8192):
    """Equivalent of torch.nn.MSELoss()(x, y)  (reduction='mean')."""
    assert x.shape == y.shape, "MSELoss requires matching shapes"
    assert tile_rows % _ACC_ROWS == 0

    n = x.size
    inv_n = 1.0 / float(n)

    xf = x.reshape(-1)
    yf = y.reshape(-1)

    if n % _LANES:
        # Only pay a pad copy when the element count is not 128-aligned.
        pad = _LANES - (n % _LANES)
        xf = jnp.pad(xf, (0, pad))
        yf = jnp.pad(yf, (0, pad))

    rows = xf.shape[0] // _LANES
    x2 = xf.reshape(rows, _LANES)
    y2 = yf.reshape(rows, _LANES)
    itemsize = jnp.dtype(x.dtype).itemsize

    if rows <= _SMALL_ROWS:
        # Small-input path: one invocation, full blocks, no scratch/grid.
        out = pl.pallas_call(
            _single_block_kernel,
            out_shape=jax.ShapeDtypeStruct((1, 1), jnp.float32),
            in_specs=[
                pl.BlockSpec(memory_space=pltpu.MemorySpace.VMEM),
                pl.BlockSpec(memory_space=pltpu.MemorySpace.VMEM),
            ],
            out_specs=pl.BlockSpec(memory_space=pltpu.MemorySpace.SMEM),
            compiler_params=pltpu.CompilerParams(
                vmem_limit_bytes=_VMEM_LIMIT),
        )(x2, y2)
        return out[0, 0] * jnp.float32(inv_n)

    tr, total_tiles, ncores = _choose_tiling(rows, tile_rows)
    tiles_per_core = _cdiv(total_tiles, ncores)
    last_block = total_tiles - 1

    def in_index_map(c, i):
        # Clamp so a (rare) trailing extra tile on the last core re-reads the
        # final valid block; its contribution is masked to zero in-kernel.
        return (jnp.minimum(c * tiles_per_core + i, last_block), 0)

    out = pl.pallas_call(
        _make_tiled_kernel(rows, tr),
        out_shape=jax.ShapeDtypeStruct((ncores, 1), jnp.float32),
        grid=(ncores, tiles_per_core),
        in_specs=[
            pl.BlockSpec((tr, _LANES), in_index_map),
            pl.BlockSpec((tr, _LANES), in_index_map),
        ],
        out_specs=pl.BlockSpec((1, 1), lambda c, i: (c, 0),
                               memory_space=pltpu.MemorySpace.SMEM),
        scratch_shapes=[pltpu.VMEM((_ACC_ROWS, _LANES), jnp.float32)],
        compiler_params=pltpu.CompilerParams(
            dimension_semantics=("parallel", "arbitrary"),
            vmem_limit_bytes=_VMEM_LIMIT),
        cost_estimate=pl.CostEstimate(
            flops=3 * rows * _LANES,
            bytes_accessed=2 * rows * _LANES * itemsize + 4 * ncores,
            transcendentals=0),
    )(x2, y2)
    return jnp.sum(out) * jnp.float32(inv_n)


if __name__ == "__main__":
    key = jax.random.PRNGKey(0)
    kx, ky, ka, kb = jax.random.split(key, 4)

    # Primary (small) case, consistent with the module's typical NCHW usage.
    x = jax.random.normal(kx, (2, 4, 16, 16), dtype=jnp.float32)
    y = jax.random.normal(ky, (2, 4, 16, 16), dtype=jnp.float32)
    loss = mse_loss_pallas(x, y)
    jax.block_until_ready(loss)
    ref = jnp.mean((x - y) ** 2)
    assert jnp.allclose(loss, ref, rtol=1e-6, atol=1e-6), (loss, ref)

    # Secondary check: exercises the tiled two-core streaming path
    # (rows = 3000 -> 2 tiles of 1536 rows, one per core, last one masked).
    a = jax.random.normal(ka, (6, 8, 80, 100), dtype=jnp.float32)
    b = jax.random.normal(kb, (6, 8, 80, 100), dtype=jnp.float32)
    loss2 = mse_loss_pallas(a, b)
    jax.block_until_ready(loss2)
    ref2 = jnp.mean((a - b) ** 2)
    assert jnp.allclose(loss2, ref2, rtol=1e-5, atol=1e-6), (loss2, ref2)

    print("KERNEL_OK")
</pallas_src>

<mosaic_0001>
module attributes {stable_mosaic.version = 11 : i64} {
  func.func @_single_block_kernel(%arg0: memref<16x128xf32, #tpu.memory_space<vmem>>, %arg1: memref<16x128xf32, #tpu.memory_space<vmem>>, %arg2: memref<1x1xf32, #tpu.memory_space<smem>>) attributes {dimension_semantics = [], scalar_prefetch = 0 : i64, scratch_operands = 0 : i64, tpu.core_type = #tpu.core_type<tc>} {
    %c0 = arith.constant 0 : index
    %c0_0 = arith.constant 0 : index
    %0 = vector.load %arg0[%c0, %c0_0] : memref<16x128xf32, #tpu.memory_space<vmem>>, vector<16x128xf32>
    %c0_1 = arith.constant 0 : index
    %c0_2 = arith.constant 0 : index
    %1 = vector.load %arg1[%c0_1, %c0_2] : memref<16x128xf32, #tpu.memory_space<vmem>>, vector<16x128xf32>
    %2 = arith.subf %0, %1 : vector<16x128xf32>
    %3 = arith.mulf %2, %2 : vector<16x128xf32>
    %4 = vector.shape_cast %3 : vector<16x128xf32> to vector<1x16x128xf32>
    %cst = arith.constant dense<0.000000e+00> : vector<1xf32>
    %5 = vector.multi_reduction <add>, %4, %cst [1, 2] : vector<1x16x128xf32> to vector<1xf32>
    %6 = vector.shape_cast %5 : vector<1xf32> to vector<1x1x1xf32>
    %7 = vector.extract %6[0, 0, 0] : f32 from vector<1x1x1xf32>
    %c0_3 = arith.constant 0 : index
    %c0_4 = arith.constant 0 : index
    %8 = memref.load %arg2[%c0_3, %c0_4] : memref<1x1xf32, #tpu.memory_space<smem>>
    memref.store %7, %arg2[%c0_3, %c0_4] : memref<1x1xf32, #tpu.memory_space<smem>>
    return
  }
}

</mosaic_0001>

<llo_original>
// kernel: tpu_custom_call.1
$region0: #{tpu_custom_call.1}
  #allocation0 [shape = 'u32[]', space=smem, size = 0x4, offset = 0x4, fixed_abs, tag = 'smem constant byte address 0x4 - core index']
  #allocation1 [shape = 'u32[144,128]{1,0:T(1,128)}', space=vmem, size = 0x12000, scoped, tag = 'internal scratch']
  %s0 = inlined_call_operand.hbm [shape: f32[16,128], index: 0, kind: input, shape index: {}]
  %s1 = inlined_call_operand.hbm [shape: f32[16,128], index: 1, kind: input, shape index: {}]
  %s2 = inlined_call_operand.hbm [shape: f32[1,1], index: 2, kind: output, shape index: {}]
  %s3 = sld [smem:[#allocation0]]
  $region26: #{tpu_custom_call.1} parent=0
    _
  %s5 = ssub.s32 1, %s3
  %s6 = scalar_select 0, %s5, %s3
  $region1: #{tpu_custom_call.1} parent=0
    #allocation2 [shape = 'u8[8192]{0}', space=vmem, size = 0x2000, scoped, tag = 'input window, operand 0, single buffered']
    #allocation3 [shape = 's32[1]{0}', space=sflag, size = 0x4, scoped, tag = 'scoped memory for tpu_custom_call.1']
    #allocation4 [shape = 's32[1]{0}', space=sflag, size = 0x4, scoped, tag = 'scoped memory for tpu_custom_call.1']
    #allocation5 [shape = 'u8[8192]{0}', space=vmem, size = 0x2000, scoped, tag = 'input window, operand 1, single buffered']
    #allocation6 [shape = 's32[1]{0}', space=sflag, size = 0x4, scoped, tag = 'scoped memory for tpu_custom_call.1']
    #allocation7 [shape = 'u8[512]{0}', space=smem, size = 0x200, scoped, tag = 'output window, operand 0, single buffered']
    %7 = vsyncpa [#allocation3], 0
    %8 = vsyncpa [#allocation6], 0
    %9 = vsyncpa [#allocation4], 0
    // Predicated region
    $region2: #{tpu_custom_call.1} parent=1 // pred_check
      _
    $region3: #{tpu_custom_call.1} parent=1 // pred_check_branch
      %11 = sbr.rel (0) target = $region5
    $region4: #{tpu_custom_call.1} parent=1 // pred_region
      %s13 = ssub.s32 256, 256
      %14 = vsyncadd [#allocation3], %s13
      %s15 = sshll.u32 [#allocation2], 4
      %s16 = int_to_ptr.vmem [resolvable:$true] %s15
      %21 = dma.hbm_to_vmem [thread:$0]  %s0, 256, %s16, [#allocation3], 128, 128, 8
    $region5: #{tpu_custom_call.1} parent=1 // pred_fallthru
      _
    // Predicated region
    $region6: #{tpu_custom_call.1} parent=1 // pred_check
      _
    $region7: #{tpu_custom_call.1} parent=1 // pred_check_branch
      %23 = sbr.rel (0) target = $region9
    $region8: #{tpu_custom_call.1} parent=1 // pred_region
      %s25 = ssub.s32 256, 256
      %26 = vsyncadd [#allocation6], %s25
      %s27 = sshll.u32 [#allocation5], 4
      %s28 = int_to_ptr.vmem [resolvable:$true] %s27
      %33 = dma.hbm_to_vmem [thread:$0]  %s1, 256, %s28, [#allocation6], 128, 128, 8
    $region9: #{tpu_custom_call.1} parent=1 // pred_fallthru
      _
    // Predicated region
    $region10: #{tpu_custom_call.1} parent=1 // pred_check
      _
    $region11: #{tpu_custom_call.1} parent=1 // pred_check_branch
      %35 = sbr.rel (0) target = $region13
    $region12: #{tpu_custom_call.1} parent=1 // pred_region
      %36 = dma.done [#allocation3], 256
    $region13: #{tpu_custom_call.1} parent=1 // pred_fallthru
      _
    // Predicated region
    $region14: #{tpu_custom_call.1} parent=1 // pred_check
      _
    $region15: #{tpu_custom_call.1} parent=1 // pred_check_branch
      %38 = sbr.rel (0) target = $region17
    $region16: #{tpu_custom_call.1} parent=1 // pred_region
      %39 = dma.done [#allocation6], 256
    $region17: #{tpu_custom_call.1} parent=1 // pred_fallthru
      _
    %v40 = vld [vmem:[#allocation2] sm:$0xff]
    %v41 = vld [vmem:[#allocation2 + $0x8] sm:$0xff]
    %v42 = vld [vmem:[#allocation5] sm:$0xff]
    %v43 = vld [vmem:[#allocation5 + $0x8] sm:$0xff]
    %v44 = vsub.f32 %v40, %v42
    %v45 = vsub.f32 %v41, %v43
    %v46 = vmul.f32 %v44, %v44
    %v47 = vmul.f32 %v45, %v45
    %v48 = vadd.f32 %v46, %v47
    %49 = vadd.xlane.f32.xlu0 %v48
    %v50 = vpop.xlane.xlu0 %49
    %v51 = vrot.slane %v50, 4
    %v52 = vadd.f32 %v50, %v51
    %v53 = vrot.slane %v52, 2
    %v54 = vadd.f32 %v52, %v53
    %v55 = vrot.slane %v54, 1
    %v56 = vadd.f32 %v54, %v55
    %s57 = vtos %v56
    %s58 = scalar_lea.smem [#allocation7], 0
    %59 = sst [smem:[%s58]] %s57
    // Predicated region
    $region18: #{tpu_custom_call.1} parent=1 // pred_check
      _
    $region19: #{tpu_custom_call.1} parent=1 // pred_check_branch
      %61 = sbr.rel (0) target = $region21
    $region20: #{tpu_custom_call.1} parent=1 // pred_region
      %s63 = ssub.s32 16, 16
      %64 = vsyncadd [#allocation4], %s63
      %67 = dma.smem_to_hbm [#allocation7], 16, %s2, [#allocation4]
    $region21: #{tpu_custom_call.1} parent=1 // pred_fallthru
      _
    // Predicated region
    $region22: #{tpu_custom_call.1} parent=1 // pred_check
      _
    $region23: #{tpu_custom_call.1} parent=1 // pred_check_branch
      %69 = sbr.rel (0) target = $region25
    $region24: #{tpu_custom_call.1} parent=1 // pred_region
      %70 = dma.done [#allocation4], 16
    $region25: #{tpu_custom_call.1} parent=1 // pred_fallthru
      _
    %71 = sfence
    %72 = vsyncpa [#allocation3], 1
    %73 = vsyncpa [#allocation6], 1
    %74 = vsyncpa [#allocation4], 1

</llo_original>
